<compile_context>
chip_gen: v5e
topology: v5e:2x2
jax: 0.10.0
libtpu: 0.0.40
codegen_flags: <defaults>
</compile_context>

<pallas_src>
import functools

import jax
import jax.numpy as jnp
from jax.experimental import pallas as pl
from jax.experimental.pallas import tpu as pltpu


EPS = 1e-6


def _round_up(n, m):
    return ((n + m - 1) // m) * m


def _posgen_kernel(x_ref, m_ref, g_ref, b_ref, w_ref, pb_ref, o_ref):
    """One tile of rows: LayerNorm -> mask -> Linear.

    x_ref : (TR, D)   input rows (native dtype, cast to f32 here)
    m_ref : (TR, 1)   mask (float)
    g_ref : (1, D)    LayerNorm gain  (a_2)
    b_ref : (1, D)    LayerNorm bias  (b_2)
    w_ref : (D, A)    Linear weight, pre-transposed (no lane padding)
    pb_ref: (1, A)    Linear bias
    o_ref : (TR, A)   output rows (unpadded; masked vst in VMEM is cheap,
                      HBM writeback is only the real A columns)
    """
    x = x_ref[...].astype(jnp.float32)
    d = x.shape[-1]

    # LayerNorm with torch-style unbiased (N-1) std; eps added to std (not var).
    mean = jnp.mean(x, axis=-1, keepdims=True)
    diff = x - mean
    var_unbiased = jnp.sum(diff * diff, axis=-1, keepdims=True) * (1.0 / (d - 1))
    std = jnp.sqrt(var_unbiased)
    inv = pl.reciprocal(std + EPS, approx=False)  # exact; keeps 1e-4 tolerance
    normed = g_ref[...] * (diff * inv) + b_ref[...]

    # Mask broadcast over the feature dim (rows are fully independent).
    masked = normed * m_ref[...]

    # Projection on the MXU (tiny; kernel is memory-bound).
    out = jnp.dot(masked, w_ref[...], preferred_element_type=jnp.float32)
    o_ref[...] = (out + pb_ref[...]).astype(o_ref.dtype)


@functools.partial(jax.jit, static_argnames=("tile_rows",))
def position_generator(x, mask, gamma, beta, w, b, *, tile_rows=2048):
    """x: (B, S, D), mask: (B, S) -> (B, S, A)."""
    B, S, D = x.shape
    A = w.shape[0]          # torch Linear weight is (A, D)
    N = B * S
    assert D > 1, "unbiased std divides by (d_model - 1)"

    # Row tile: large to amortize the ~0.35 us per-grid-step overhead, capped so
    # the grid has >= 2 steps (v7x megacore) when N is large enough, and never
    # exceeding the (8-rounded) row count. Ragged last tile handled by Pallas
    # partial-block semantics; OOB output rows are dropped, and garbage OOB
    # input rows cannot contaminate valid rows (no cross-row reduction).
    half = _round_up(pl.cdiv(N, 2), 8)
    tr = min(tile_rows, max(512, half))
    tr = min(tr, _round_up(N, 8))
    grid = (pl.cdiv(N, tr),)

    x2 = x.reshape(N, D)                              # native dtype, no copy
    m2 = mask.reshape(N, 1).astype(jnp.float32)       # tiny (N floats)
    g2 = gamma.reshape(1, D).astype(jnp.float32)
    be2 = beta.reshape(1, D).astype(jnp.float32)
    wt = w.T.astype(jnp.float32)                      # (D, A), no lane padding
    pb2 = b.reshape(1, A).astype(jnp.float32)

    itemsize = jnp.dtype(x.dtype).itemsize
    cost = pl.CostEstimate(
        flops=2 * N * D * A + 8 * N * D,
        transcendentals=N,  # one sqrt (+recip) per row
        bytes_accessed=(N * D * itemsize          # x read
                        + N * 4                   # mask read
                        + N * A * itemsize        # output write (unpadded)
                        + 4 * (D * A + 2 * D + A)),
    )

    out = pl.pallas_call(
        _posgen_kernel,
        out_shape=jax.ShapeDtypeStruct((N, A), x.dtype),
        grid_spec=pltpu.PrefetchScalarGridSpec(
            num_scalar_prefetch=0,
            grid=grid,
            in_specs=[
                pl.BlockSpec((tr, D), lambda i: (i, 0)),   # x rows
                pl.BlockSpec((tr, 1), lambda i: (i, 0)),   # mask rows
                pl.BlockSpec((1, D), lambda i: (0, 0)),    # gamma (resident)
                pl.BlockSpec((1, D), lambda i: (0, 0)),    # beta  (resident)
                pl.BlockSpec((D, A), lambda i: (0, 0)),    # W^T   (resident)
                pl.BlockSpec((1, A), lambda i: (0, 0)),    # proj bias
            ],
            out_specs=pl.BlockSpec((tr, A), lambda i: (i, 0)),
        ),
        compiler_params=pltpu.CompilerParams(
            dimension_semantics=("parallel",)),  # megacore sharding on v7x
        cost_estimate=cost,
    )(x2, m2, g2, be2, wt, pb2)

    return out.reshape(B, S, A)


def _reference(x, mask, gamma, beta, w, b):
    x = x.astype(jnp.float32)
    mean = jnp.mean(x, axis=-1, keepdims=True)
    diff = x - mean
    var_unbiased = jnp.sum(diff * diff, axis=-1, keepdims=True) / (x.shape[-1] - 1)
    std = jnp.sqrt(var_unbiased)
    normed = gamma * diff / (std + EPS) + beta
    masked = normed * mask.astype(jnp.float32)[..., None]
    return masked @ w.T + b


if __name__ == "__main__":
    # Small shapes consistent with the forward: x (B, S, d_model), mask (B, S).
    B, S, d_model, d_atom = 2, 8, 32, 16

    key = jax.random.PRNGKey(0)
    kx, km, kg, kb, kw, kpb = jax.random.split(key, 6)

    x = jax.random.normal(kx, (B, S, d_model), dtype=jnp.float32)
    mask = (jax.random.uniform(km, (B, S)) > 0.3)  # boolean, unsqueezed+float in fwd

    # Deterministic parameter init (synthetic, not a checkpoint load).
    gamma = jnp.ones((d_model,), jnp.float32) + 0.01 * jax.random.normal(kg, (d_model,))
    beta = 0.01 * jax.random.normal(kb, (d_model,), dtype=jnp.float32)
    w = jax.random.normal(kw, (d_atom, d_model), dtype=jnp.float32) * (1.0 / jnp.sqrt(d_model))
    b = 0.01 * jax.random.normal(kpb, (d_atom,), dtype=jnp.float32)

    y = position_generator(x, mask, gamma, beta, w, b)
    y = jax.block_until_ready(y)

    y_ref = _reference(x, mask, gamma, beta, w, b)
    assert y.shape == (B, S, d_atom)
    assert jnp.allclose(y, y_ref, atol=1e-4, rtol=1e-4), "mismatch vs reference"

    # Second check exercising the ragged / partial-final-block path
    # (B*S = 30, not a multiple of 8, tile rounds to 32 with a partial block).
    B2, S2 = 3, 10
    x_b = jax.random.normal(kx, (B2, S2, d_model), dtype=jnp.float32)
    mask_b = (jax.random.uniform(km, (B2, S2)) > 0.5)
    y_b = jax.block_until_ready(position_generator(x_b, mask_b, gamma, beta, w, b))
    y_b_ref = _reference(x_b, mask_b, gamma, beta, w, b)
    assert y_b.shape == (B2, S2, d_atom)
    assert jnp.allclose(y_b, y_b_ref, atol=1e-4, rtol=1e-4), "mismatch vs reference (ragged)"

    print("KERNEL_OK")
</pallas_src>

<mosaic_0001>
module attributes {stable_mosaic.version = 11 : i64} {
  func.func @_posgen_kernel(%arg0: i32, %arg1: memref<16x32xf32, #tpu.memory_space<vmem>>, %arg2: memref<16x1xf32, #tpu.memory_space<vmem>>, %arg3: memref<1x32xf32, #tpu.memory_space<vmem>>, %arg4: memref<1x32xf32, #tpu.memory_space<vmem>>, %arg5: memref<32x16xf32, #tpu.memory_space<vmem>>, %arg6: memref<1x16xf32, #tpu.memory_space<vmem>>, %arg7: memref<16x16xf32, #tpu.memory_space<vmem>>) attributes {dimension_semantics = [#tpu.dimension_semantics<parallel>], iteration_bounds = array<i64: 1>, scalar_prefetch = 0 : i64, scratch_operands = 0 : i64, tpu.core_type = #tpu.core_type<tc>, window_params = [{transform_indices = @transform_0, window_bounds = array<i64: 16, 32>}, {transform_indices = @transform_1, window_bounds = array<i64: 16, 1>}, {pipeline_mode = #tpu.pipeline_mode<synchronous>, transform_indices = @transform_2, window_bounds = array<i64: 1, 32>}, {pipeline_mode = #tpu.pipeline_mode<synchronous>, transform_indices = @transform_3, window_bounds = array<i64: 1, 32>}, {pipeline_mode = #tpu.pipeline_mode<synchronous>, transform_indices = @transform_4, window_bounds = array<i64: 32, 16>}, {pipeline_mode = #tpu.pipeline_mode<synchronous>, transform_indices = @transform_5, window_bounds = array<i64: 1, 16>}, {transform_indices = @transform_6, window_bounds = array<i64: 16, 16>}]} {
    %c0 = arith.constant 0 : index
    %c0_0 = arith.constant 0 : index
    %0 = vector.load %arg1[%c0, %c0_0] : memref<16x32xf32, #tpu.memory_space<vmem>>, vector<16x32xf32>
    %cst = arith.constant dense<0.000000e+00> : vector<16xf32>
    %1 = vector.multi_reduction <add>, %0, %cst [1] : vector<16x32xf32> to vector<16xf32>
    %2 = vector.shape_cast %1 : vector<16xf32> to vector<16x1xf32>
    %cst_1 = arith.constant 3.200000e+01 : f32
    %3 = vector.broadcast %cst_1 : f32 to vector<16x1xf32>
    %4 = arith.divf %2, %3 : vector<16x1xf32>
    %5 = vector.broadcast %4 : vector<16x1xf32> to vector<16x32xf32>
    %6 = arith.subf %0, %5 : vector<16x32xf32>
    %7 = arith.mulf %6, %6 : vector<16x32xf32>
    %cst_2 = arith.constant dense<0.000000e+00> : vector<16xf32>
    %8 = vector.multi_reduction <add>, %7, %cst_2 [1] : vector<16x32xf32> to vector<16xf32>
    %9 = vector.shape_cast %8 : vector<16xf32> to vector<16x1xf32>
    %cst_3 = arith.constant 0.0322580636 : f32
    %10 = vector.broadcast %cst_3 : f32 to vector<16x1xf32>
    %11 = arith.mulf %9, %10 : vector<16x1xf32>
    %12 = math.sqrt %11 : vector<16x1xf32>
    %cst_4 = arith.constant 9.99999997E-7 : f32
    %13 = vector.broadcast %cst_4 : f32 to vector<16x1xf32>
    %14 = arith.addf %12, %13 : vector<16x1xf32>
    %15 = tpu.reciprocal %14 : vector<16x1xf32> -> vector<16x1xf32>
    %c0_5 = arith.constant 0 : index
    %c0_6 = arith.constant 0 : index
    %16 = vector.load %arg3[%c0_5, %c0_6] : memref<1x32xf32, #tpu.memory_space<vmem>>, vector<1x32xf32>
    %17 = vector.broadcast %15 : vector<16x1xf32> to vector<16x32xf32>
    %18 = arith.mulf %6, %17 : vector<16x32xf32>
    %19 = vector.broadcast %16 : vector<1x32xf32> to vector<16x32xf32>
    %20 = arith.mulf %19, %18 : vector<16x32xf32>
    %c0_7 = arith.constant 0 : index
    %c0_8 = arith.constant 0 : index
    %21 = vector.load %arg4[%c0_7, %c0_8] : memref<1x32xf32, #tpu.memory_space<vmem>>, vector<1x32xf32>
    %22 = vector.broadcast %21 : vector<1x32xf32> to vector<16x32xf32>
    %23 = arith.addf %20, %22 : vector<16x32xf32>
    %c0_9 = arith.constant 0 : index
    %c0_10 = arith.constant 0 : index
    %24 = vector.load %arg2[%c0_9, %c0_10] : memref<16x1xf32, #tpu.memory_space<vmem>>, vector<16x1xf32>
    %25 = vector.broadcast %24 : vector<16x1xf32> to vector<16x32xf32>
    %26 = arith.mulf %23, %25 : vector<16x32xf32>
    %c0_11 = arith.constant 0 : index
    %c0_12 = arith.constant 0 : index
    %27 = vector.load %arg5[%c0_11, %c0_12] : memref<32x16xf32, #tpu.memory_space<vmem>>, vector<32x16xf32>
    %cst_13 = arith.constant dense<0.000000e+00> : vector<16x16xf32>
    %28 = tpu.matmul %26, %27, %cst_13 {dimension_numbers = #tpu.dot_dimension_numbers<[1], [0], [0], [1], [0, 0, 1, 1], [], []>} : vector<16x32xf32>, vector<32x16xf32>, vector<16x16xf32> -> vector<16x16xf32>
    %c0_14 = arith.constant 0 : index
    %c0_15 = arith.constant 0 : index
    %29 = vector.load %arg6[%c0_14, %c0_15] : memref<1x16xf32, #tpu.memory_space<vmem>>, vector<1x16xf32>
    %30 = vector.broadcast %29 : vector<1x16xf32> to vector<16x16xf32>
    %31 = arith.addf %28, %30 : vector<16x16xf32>
    %c0_16 = arith.constant 0 : index
    %c0_17 = arith.constant 0 : index
    %32 = vector.load %arg7[%c0_16, %c0_17] : memref<16x16xf32, #tpu.memory_space<vmem>>, vector<16x16xf32>
    tpu.vector_store %arg7[%c0_16, %c0_17], %31 {strides = array<i32>} : memref<16x16xf32, #tpu.memory_space<vmem>>, vector<16x16xf32>,
    return
  }
  func.func @transform_0(%arg0: i32) -> (i32, i32) {
    %c0_i32 = arith.constant 0 : i32
    %c0_i32_0 = arith.constant 0 : i32
    return %arg0, %c0_i32 : i32, i32
  }
  func.func @transform_1(%arg0: i32) -> (i32, i32) {
    %c0_i32 = arith.constant 0 : i32
    %c0_i32_0 = arith.constant 0 : i32
    return %arg0, %c0_i32 : i32, i32
  }
  func.func @transform_2(%arg0: i32) -> (i32, i32) {
    %c0_i32 = arith.constant 0 : i32
    %c0_i32_0 = arith.constant 0 : i32
    %c0_i32_1 = arith.constant 0 : i32
    return %c0_i32, %c0_i32_0 : i32, i32
  }
  func.func @transform_3(%arg0: i32) -> (i32, i32) {
    %c0_i32 = arith.constant 0 : i32
    %c0_i32_0 = arith.constant 0 : i32
    %c0_i32_1 = arith.constant 0 : i32
    return %c0_i32, %c0_i32_0 : i32, i32
  }
  func.func @transform_4(%arg0: i32) -> (i32, i32) {
    %c0_i32 = arith.constant 0 : i32
    %c0_i32_0 = arith.constant 0 : i32
    %c0_i32_1 = arith.constant 0 : i32
    return %c0_i32, %c0_i32_0 : i32, i32
  }
  func.func @transform_5(%arg0: i32) -> (i32, i32) {
    %c0_i32 = arith.constant 0 : i32
    %c0_i32_0 = arith.constant 0 : i32
    %c0_i32_1 = arith.constant 0 : i32
    return %c0_i32, %c0_i32_0 : i32, i32
  }
  func.func @transform_6(%arg0: i32) -> (i32, i32) {
    %c0_i32 = arith.constant 0 : i32
    %c0_i32_0 = arith.constant 0 : i32
    return %arg0, %c0_i32 : i32, i32
  }
}

</mosaic_0001>

<llo_original>
// kernel: position_generator.1
$region0: #{position_generator.1}
  #allocation0 [shape = 'u32[]', space=smem, size = 0x4, offset = 0x4, fixed_abs, tag = 'smem constant byte address 0x4 - core index']
  #allocation1 [shape = 'u32[72,128]{1,0:T(1,128)}', space=vmem, size = 0x9000, scoped, tag = 'internal scratch']
  %s0 = inlined_call_operand.vmem [shape: f32[16,32], index: 0, kind: input, shape index: {}]
  %s1 = inlined_call_operand.vmem [shape: f32[16,1], index: 1, kind: input, shape index: {}]
  %s2 = inlined_call_operand.vmem [shape: f32[1,32], index: 2, kind: input, shape index: {}]
  %s3 = inlined_call_operand.vmem [shape: f32[1,32], index: 3, kind: input, shape index: {}]
  %s4 = inlined_call_operand.vmem [shape: f32[32,16], index: 4, kind: input, shape index: {}]
  %s5 = inlined_call_operand.vmem [shape: f32[1,16], index: 5, kind: input, shape index: {}]
  %s6 = inlined_call_operand.hbm [shape: f32[16,16], index: 6, kind: output, shape index: {}]
  %s7 = sld [smem:[#allocation0]]
  $region34: #{position_generator.1} parent=0
    _
  %s9 = ssub.s32 1, %s7
  %s10 = scalar_select 0, %s9, %s7
  $region1: #{position_generator.1} parent=0
    #allocation2 [shape = 'u8[8192]{0}', space=vmem, size = 0x2000, scoped, tag = 'output window, operand 0, single buffered']
    #allocation3 [shape = 's32[1]{0}', space=sflag, size = 0x4, scoped, tag = 'scoped memory for position_generator.1']
    %11 = vsyncpa [#allocation3], 0
    // Predicated region
    $region2: #{position_generator.1} parent=1 // pred_check
      _
    $region3: #{position_generator.1} parent=1 // pred_check_branch
      %13 = sbr.rel (0) target = $region5
    $region4: #{position_generator.1} parent=1 // pred_region
      _
    $region5: #{position_generator.1} parent=1 // pred_fallthru
      _
    // Predicated region
    $region6: #{position_generator.1} parent=1 // pred_check
      _
    $region7: #{position_generator.1} parent=1 // pred_check_branch
      %15 = sbr.rel (0) target = $region9
    $region8: #{position_generator.1} parent=1 // pred_region
      _
    $region9: #{position_generator.1} parent=1 // pred_fallthru
      _
    // Predicated region
    $region10: #{position_generator.1} parent=1 // pred_check
      _
    $region11: #{position_generator.1} parent=1 // pred_check_branch
      %17 = sbr.rel (0) target = $region13
    $region12: #{position_generator.1} parent=1 // pred_region
      _
    $region13: #{position_generator.1} parent=1 // pred_fallthru
      _
    // Predicated region
    $region14: #{position_generator.1} parent=1 // pred_check
      _
    $region15: #{position_generator.1} parent=1 // pred_check_branch
      %19 = sbr.rel (0) target = $region17
    $region16: #{position_generator.1} parent=1 // pred_region
      _
    $region17: #{position_generator.1} parent=1 // pred_fallthru
      _
    // Predicated region
    $region18: #{position_generator.1} parent=1 // pred_check
      _
    $region19: #{position_generator.1} parent=1 // pred_check_branch
      %21 = sbr.rel (0) target = $region21
    $region20: #{position_generator.1} parent=1 // pred_region
      _
    $region21: #{position_generator.1} parent=1 // pred_fallthru
      _
    // Predicated region
    $region22: #{position_generator.1} parent=1 // pred_check
      _
    $region23: #{position_generator.1} parent=1 // pred_check_branch
      %23 = sbr.rel (0) target = $region25
    $region24: #{position_generator.1} parent=1 // pred_region
      _
    $region25: #{position_generator.1} parent=1 // pred_fallthru
      _
    %v24 = vld [vmem:[%s0] sm:$0xff]
    %v25 = vld [vmem:[%s0 + $0x8] sm:$0xff]
    %vm26 = vcmask 261120
    %v27 = vsel %vm26, %v24, 0.0
    %28 = vadd.xlane.f32.xlu0 %v27
    %v29 = vpop.xlane.xlu0 %28
    %v30 = vsel %vm26, %v25, 0.0
    %31 = vadd.xlane.f32.xlu0 %v30
    %v32 = vpop.xlane.xlu0 %31
    %v33 = vrcp.pop 32.0
    %v34 = vmul.f32 32.0, %v33
    %v35 = vsub.f32 1.0, %v34
    %v36 = vmul.f32 %v33, %v35
    %v37 = vadd.f32 %v33, %v36
    %vm38 = vweird.f32 %v33
    %v39 = vsel %vm38, %v33, %v37
    %v40 = vmul.f32 %v29, %v39
    %v41 = vmul.f32 %v32, %v39
    %v42 = vsub.f32 %v24, %v40
    %v43 = vsub.f32 %v25, %v41
    %v44 = vmul.f32 %v42, %v42
    %v45 = vmul.f32 %v43, %v43
    %v46 = vsel %vm26, %v44, 0.0
    %47 = vadd.xlane.f32.xlu0 %v46
    %v48 = vpop.xlane.xlu0 %47
    %v49 = vsel %vm26, %v45, 0.0
    %50 = vadd.xlane.f32.xlu0 %v49
    %v51 = vpop.xlane.xlu0 %50
    %v52 = vmul.f32 %v48, 0.032258064
    %v53 = vmul.f32 %v51, 0.032258064
    %v54 = vrsqrt.pop %v52
    %v55 = vmul.f32 %v54, %v52
    %v56 = vmul.f32 %v55, %v54
    %v57 = vmul.f32 0.5, %v56
    %v58 = vsub.f32 1.5, %v57
    %v59 = vmul.f32 %v54, %v58
    %v60 = vmul.f32 %v52, %v59
    %vm61 = vcmp.eq.f32.partialorder %v52, inf
    %v62 = vsel %vm61, %v52, %v60
    %vm63 = vcmp.eq.f32.partialorder %v52, 0.0
    %v64 = vand.u32 %v52, 2147483648
    %v65 = vsel %vm63, %v64, %v62
    %v66 = vrsqrt.pop %v53
    %v67 = vmul.f32 %v66, %v53
    %v68 = vmul.f32 %v67, %v66
    %v69 = vmul.f32 0.5, %v68
    %v70 = vsub.f32 1.5, %v69
    %v71 = vmul.f32 %v66, %v70
    %v72 = vmul.f32 %v53, %v71
    %vm73 = vcmp.eq.f32.partialorder %v53, inf
    %v74 = vsel %vm73, %v53, %v72
    %vm75 = vcmp.eq.f32.partialorder %v53, 0.0
    %v76 = vand.u32 %v53, 2147483648
    %v77 = vsel %vm75, %v76, %v74
    %v78 = vadd.f32 %v65, 1e-06
    %v79 = vadd.f32 %v77, 1e-06
    %v80 = vrcp.pop %v78
    %v81 = vmul.f32 %v78, %v80
    %v82 = vsub.f32 1.0, %v81
    %v83 = vmul.f32 %v80, %v82
    %v84 = vadd.f32 %v80, %v83
    %vm85 = vweird.f32 %v78
    %vm86 = vweird.f32 %v80
    %vm87 = vmor %vm85, %vm86
    %v88 = vsel %vm87, %v80, %v84
    %v89 = vand.u32 2147483647, %v78
    %vm90 = vcmp.eq.f32.partialorder %v89, 8.507059e+37
    %v91 = vand.u32 %v78, 2147483648
    %v92 = vor.u32 1.1754944e-38, %v91
    %v93 = vsel %vm90, %v92, %v88
    %v94 = vrcp.pop %v79
    %v95 = vmul.f32 %v79, %v94
    %v96 = vsub.f32 1.0, %v95
    %v97 = vmul.f32 %v94, %v96
    %v98 = vadd.f32 %v94, %v97
    %vm99 = vweird.f32 %v79
    %vm100 = vweird.f32 %v94
    %vm101 = vmor %vm99, %vm100
    %v102 = vsel %vm101, %v94, %v98
    %v103 = vand.u32 2147483647, %v79
    %vm104 = vcmp.eq.f32.partialorder %v103, 8.507059e+37
    %v105 = vand.u32 %v79, 2147483648
    %v106 = vor.u32 1.1754944e-38, %v105
    %v107 = vsel %vm104, %v106, %v102
    %v108 = vld [vmem:[%s2] sm:$0x1]
    %v109 = vmul.f32 %v42, %v93
    %v110 = vmul.f32 %v43, %v107
    %v112 = vperm.slane %v108, 0
    %v114 = vmul.f32 %v112, %v109
    %v115 = vmul.f32 %v112, %v110
    %v116 = vld [vmem:[%s3] sm:$0x1]
    %v118 = vperm.slane %v116, 0
    %v120 = vadd.f32 %v114, %v118
    %v121 = vadd.f32 %v115, %v118
    %v122 = vld [vmem:[%s1] sm:$0xff]
    %v123 = vld [vmem:[%s1 + $0x8] sm:$0xff]
    %125 = vset.pattern.permute.xlu0 0
    %126 = vperm.xlu0 %125, %v122
    %v127 = vpop.permute.xlu0 %126
    %130 = vset.pattern.permute.xlu0 0
    %131 = vperm.xlu0 %130, %v123
    %v132 = vpop.permute.xlu0 %131
    %v134 = vmul.f32 %v120, %v127
    %v135 = vmul.f32 %v121, %v132
    %v136 = vld [vmem:[%s4] sm:$0xff]
    %v137 = vld [vmem:[%s4 + $0x8] sm:$0xff]
    %v138 = vld [vmem:[%s4 + $0x10] sm:$0xff]
    %v139 = vld [vmem:[%s4 + $0x18] sm:$0xff]
    %v140 = vld [vmem:[%s5] sm:$0x1]
    %v142 = vperm.slane %v140, 0
    %v145 = vsel %vm26, %v134, 0
    %v148 = vsel %vm26, %v135, 0
    %150 = vmatpush.msra.mxu0 0.0
    %151 = vmatpush.msra.mxu0 0.0
    %152 = vmatpush.msra.mxu0 0.0
    %153 = vmatpush.msra.mxu0 0.0
    %154 = vmatpush.msra.mxu0 0.0
    %155 = vmatpush.msra.mxu0 0.0
    %156 = vmatpush.msra.mxu0 0.0
    %157 = vmatpush.msra.mxu0 0.0
    %158 = vmatpush.msra.mxu0 0.0
    %159 = vmatpush.msra.mxu0 0.0
    %160 = vmatpush.msra.mxu0 0.0
    %161 = vmatpush.msra.mxu0 0.0
    %162 = vmatpush.msra.mxu0 %v139
    %163 = vmatpush.msra.mxu0 %v138
    %164 = vmatpush.msra.mxu0 %v137
    %165 = vmatpush.msra.mxu0 %v136
    %166 = vmatmul.f32.gmra.mxu0 %v145
    %v167 = vpop.f32.mrf.mxu0
    %v168 = vadd.f32 %v142, %v167
    %169 = vmatmul.f32.gmra.mxu0 %v148
    %v170 = vpop.f32.mrf.mxu0
    %v171 = vadd.f32 %v142, %v170
    %172 = vdwg.mxu0
    %vm173 = vcmask 130048
    %174 = vst.msk [vmem:[#allocation2] sm:$0xff] %vm173, %v168
    %175 = vst.msk [vmem:[#allocation2 + $0x8] sm:$0xff] %vm173, %v171
    // Predicated region
    $region26: #{position_generator.1} parent=1 // pred_check
      _
    $region27: #{position_generator.1} parent=1 // pred_check_branch
      %177 = sbr.rel (0) target = $region29
    $region28: #{position_generator.1} parent=1 // pred_region
      %179 = vsyncadd [#allocation3], 0
      %s180 = sshll.u32 [#allocation2], 4
      %s181 = int_to_ptr.vmem [resolvable:$true] %s180
      %s182 = sshll.u32 %s6, 4
      %s183 = int_to_ptr.hbm [resolvable:$true] %s182
      %188 = dma.vmem_to_hbm [thread:$0]  %s181, 256, %s183, [#allocation3], 128, 128, 8
    $region29: #{position_generator.1} parent=1 // pred_fallthru
      _
    // Predicated region
    $region30: #{position_generator.1} parent=1 // pred_check
      _
    $region31: #{position_generator.1} parent=1 // pred_check_branch
      %190 = sbr.rel (0) target = $region33
    $region32: #{position_generator.1} parent=1 // pred_region
      %192 = dma.done [#allocation3], 256
    $region33: #{position_generator.1} parent=1 // pred_fallthru
      _
    %193 = vsyncpa [#allocation3], 1

</llo_original>
